<compile_context>
chip_gen: v7x
topology: tpu7x:2x2x1
jax: 0.10.0
libtpu: 0.0.40
codegen_flags: <defaults>
</compile_context>

<pallas_src>
import functools

import jax
import jax.numpy as jnp
import numpy as np
from jax.experimental import pallas as pl
from jax.experimental.pallas import tpu as pltpu


_VMEM_LIMIT_BYTES = 32 * 1024 * 1024   # explicit scoped-VMEM limit; safe on v5e/v6e/v7x
_TARGET_BLOCK_BYTES = 4 << 20          # ~4 MiB blocks so per-step DMA >> 0.35 us fixed overhead
_LANE_CAP = 65536                      # spatial (lane) tile cap, multiple of 128


def _round_up(n, m):
    return ((n + m - 1) // m) * m


# ----------------------------------------------------------------------------
# Kernel 1: global sum + max over the spatial axis, spatially tiled.
#   x block:   (RT, TS)
#   outputs:   (RT, 1) mean, (RT, 1) max   (resident across the spatial grid axis)
# ----------------------------------------------------------------------------
def _pool_kernel(x_ref, mean_ref, max_ref, *, inv_s, ts, s_total, needs_mask):
    j = pl.program_id(1)
    last = pl.num_programs(1) - 1

    @pl.when(j == 0)
    def _():
        mean_ref[...] = jnp.zeros_like(mean_ref)
        max_ref[...] = jnp.full_like(max_ref, -jnp.inf)

    # Always accumulate in f32 (bf16 accumulation over ~2M elements is catastrophic).
    x = x_ref[...].astype(jnp.float32)

    if needs_mask:
        # Only the last spatial tile can stick out past S; mask its padded tail lanes
        # (garbage must contribute 0 to the sum and -inf to the max).  Non-last tiles
        # take the cheap unmasked path.
        @pl.when(j != last)
        def _():
            mean_ref[...] += jnp.sum(x, axis=1, keepdims=True)
            max_ref[...] = jnp.maximum(max_ref[...],
                                       jnp.max(x, axis=1, keepdims=True))

        @pl.when(j == last)
        def _():
            col = jax.lax.broadcasted_iota(jnp.int32, x.shape, 1) + j * ts
            valid = col < s_total
            mean_ref[...] += jnp.sum(jnp.where(valid, x, 0.0), axis=1, keepdims=True)
            max_ref[...] = jnp.maximum(
                max_ref[...],
                jnp.max(jnp.where(valid, x, -jnp.inf), axis=1, keepdims=True))
    else:
        mean_ref[...] += jnp.sum(x, axis=1, keepdims=True)
        max_ref[...] = jnp.maximum(max_ref[...],
                                   jnp.max(x, axis=1, keepdims=True))

    @pl.when(j == last)
    def _():
        mean_ref[...] = mean_ref[...] * inv_s   # apply 1/S once at finalize


# ----------------------------------------------------------------------------
# Kernel 2: scale the input by the per-(b,c) attention weight (lane broadcast).
# ----------------------------------------------------------------------------
def _scale_kernel(x_ref, att_ref, o_ref):
    o_ref[...] = x_ref[...] * att_ref[...]


# ----------------------------------------------------------------------------
# Static (trace-time) tile selection.
# ----------------------------------------------------------------------------
def _choose_tiles(BC, S, itemsize):
    """Spatial tile TS: multiple of 128, capped at _LANE_CAP; prefer an exact divisor of S
    (no tail mask), otherwise use the cap and mask the tail inside the pool kernel.
    Row tile RT: multiple of 8, grown toward _TARGET_BLOCK_BYTES but only while the BC grid
    keeps >= 2 steps (the pool pass can only megacore-shard the BC axis on v7x)."""
    s_pad = _round_up(S, 128)
    if s_pad <= _LANE_CAP:
        TS = s_pad
    else:
        TS = 0
        t = _LANE_CAP
        while t >= _LANE_CAP // 4:        # only accept reasonably large exact divisors
            if S % t == 0:
                TS = t
                break
            t -= 128
        if TS == 0:
            TS = _LANE_CAP                # no good exact divisor: mask the padded tail
    needs_mask = (S % TS) != 0
    s_grid = pl.cdiv(S, TS)

    if BC <= 8:
        RT = BC
    else:
        RT = 8
        while (RT * 2 * TS * itemsize <= _TARGET_BLOCK_BYTES
               and BC % (RT * 2) == 0
               and BC // (RT * 2) >= 2):
            RT *= 2
    bc_grid = pl.cdiv(BC, RT)
    return RT, TS, bc_grid, s_grid, needs_mask


# ----------------------------------------------------------------------------
# Wrapper
# ----------------------------------------------------------------------------
def _channel_attention_3d(x, w1, w2):
    b, c, d, h, w = x.shape
    S = d * h * w
    BC = b * c
    x2d = x.reshape(BC, S)

    RT, TS, bc_grid, s_grid, needs_mask = _choose_tiles(BC, S, x.dtype.itemsize)
    inv_s = 1.0 / float(S)

    # --- pooling: mean + max over the spatial axis ---
    avg2d, max2d = pl.pallas_call(
        functools.partial(_pool_kernel, inv_s=inv_s, ts=TS, s_total=S,
                          needs_mask=needs_mask),
        out_shape=(
            jax.ShapeDtypeStruct((BC, 1), jnp.float32),
            jax.ShapeDtypeStruct((BC, 1), jnp.float32),
        ),
        grid=(bc_grid, s_grid),
        in_specs=[pl.BlockSpec((RT, TS), lambda i, j: (i, j))],
        out_specs=(
            pl.BlockSpec((RT, 1), lambda i, j: (i, 0)),
            pl.BlockSpec((RT, 1), lambda i, j: (i, 0)),
        ),
        compiler_params=pltpu.CompilerParams(
            dimension_semantics=("parallel", "arbitrary"),
            vmem_limit_bytes=_VMEM_LIMIT_BYTES),
    )(x2d)

    avg_bc = avg2d.reshape(b, c)
    max_bc = max2d.reshape(b, c)

    # --- shared bottleneck MLP + sigmoid: a few hundred FLOPs, keep in plain jnp ---
    def fc(v):
        hdn = jnp.dot(v, w1, preferred_element_type=jnp.float32)
        hdn = jnp.where(hdn > 0, hdn, jnp.expm1(hdn))  # ELU(alpha=1), expm1 for accuracy near 0
        return jnp.dot(hdn, w2, preferred_element_type=jnp.float32)

    att = jax.nn.sigmoid(fc(avg_bc) + fc(max_bc))
    att2d = att.reshape(BC, 1).astype(x.dtype)

    # --- scale x by the attention weights, in place over x's (donated) buffer ---
    y2d = pl.pallas_call(
        _scale_kernel,
        out_shape=jax.ShapeDtypeStruct((BC, S), x.dtype),
        grid=(bc_grid, s_grid),
        in_specs=[
            pl.BlockSpec((RT, TS), lambda i, j: (i, j)),
            pl.BlockSpec((RT, 1), lambda i, j: (i, 0)),
        ],
        out_specs=pl.BlockSpec((RT, TS), lambda i, j: (i, j)),
        input_output_aliases={0: 0},
        compiler_params=pltpu.CompilerParams(
            dimension_semantics=("parallel", "parallel"),
            vmem_limit_bytes=_VMEM_LIMIT_BYTES),
    )(x2d, att2d)

    return y2d.reshape(b, c, d, h, w)


# Donate x so the scale pass's input_output_aliases actually takes effect (no hidden
# defensive copy of x).  Callers must not reuse x after this call.
channel_attention_3d = jax.jit(_channel_attention_3d, donate_argnums=(0,))


# ----------------------------------------------------------------------------
# Pure-JAX reference (mirrors the PyTorch ChannelAttentionModule3D.forward exactly)
# ----------------------------------------------------------------------------
def reference(x, w1, w2):
    avg = jnp.mean(x, axis=(2, 3, 4))
    mx = jnp.max(x, axis=(2, 3, 4))

    def fc(v):
        hdn = v @ w1
        hdn = jnp.where(hdn > 0, hdn, jnp.expm1(hdn))
        return hdn @ w2

    att = jax.nn.sigmoid(fc(avg) + fc(mx))
    return x * att[:, :, None, None, None]


if __name__ == "__main__":
    # Small shapes consistent with the module; reduction_ratio=16 needs c >= 16.
    B, C, D, H, W = 2, 32, 4, 8, 16
    REDUCTION = 16
    HIDDEN = C // REDUCTION  # = 2

    key = jax.random.PRNGKey(0)
    kx, k1, k2 = jax.random.split(key, 3)

    x = jax.random.normal(kx, (B, C, D, H, W), dtype=jnp.float32)
    # PyTorch Linear weight is (out, in); we store the transposed layouts so the
    # kernel computes v @ W directly.
    w1 = jax.random.normal(k1, (C, HIDDEN), dtype=jnp.float32) * 0.2  # fc[0].weight.T
    w2 = jax.random.normal(k2, (HIDDEN, C), dtype=jnp.float32) * 0.2  # fc[2].weight.T

    # Compute the reference BEFORE the kernel call: x's buffer is donated to the kernel.
    y_ref = reference(x, w1, w2)
    y_ref = jax.block_until_ready(y_ref)

    y = channel_attention_3d(x, w1, w2)
    y = jax.block_until_ready(y)

    np.testing.assert_allclose(np.asarray(y), np.asarray(y_ref),
                               rtol=1e-5, atol=1e-5)

    print("KERNEL_OK")
</pallas_src>

<mosaic_0001>
module attributes {stable_mosaic.version = 11 : i64} {
  func.func @_pool_kernel(%arg0: i32, %arg1: i32, %arg2: memref<32x512xf32, #tpu.memory_space<vmem>>, %arg3: memref<32x1xf32, #tpu.memory_space<vmem>>, %arg4: memref<32x1xf32, #tpu.memory_space<vmem>>) attributes {dimension_semantics = [#tpu.dimension_semantics<parallel>, #tpu.dimension_semantics<arbitrary>], iteration_bounds = array<i64: 2, 1>, scalar_prefetch = 0 : i64, scratch_operands = 0 : i64, tpu.core_type = #tpu.core_type<tc>, window_params = [{transform_indices = @transform_0, window_bounds = array<i64: 32, 512>}, {transform_indices = @transform_1, window_bounds = array<i64: 32, 1>}, {transform_indices = @transform_2, window_bounds = array<i64: 32, 1>}]} {
    %c0_i32 = arith.constant 0 : i32
    %0 = arith.cmpi eq, %arg1, %c0_i32 : i32
    %1 = arith.extui %0 : i1 to i32
    %c0_i32_0 = arith.constant 0 : i32
    %2 = arith.cmpi ne, %1, %c0_i32_0 : i32
    scf.if %2 {
      %cst_13 = arith.constant 0.000000e+00 : f32
      %17 = vector.broadcast %cst_13 : f32 to vector<32x1xf32>
      %c0_14 = arith.constant 0 : index
      %c0_15 = arith.constant 0 : index
      %18 = vector.load %arg3[%c0_14, %c0_15] : memref<32x1xf32, #tpu.memory_space<vmem>>, vector<32x1xf32>
      tpu.vector_store %arg3[%c0_14, %c0_15], %17 {strides = array<i32>} : memref<32x1xf32, #tpu.memory_space<vmem>>, vector<32x1xf32>,
      %cst_16 = arith.constant 0xFF800000 : f32
      %19 = vector.broadcast %cst_16 : f32 to vector<32x1xf32>
      %c0_17 = arith.constant 0 : index
      %c0_18 = arith.constant 0 : index
      %20 = vector.load %arg4[%c0_17, %c0_18] : memref<32x1xf32, #tpu.memory_space<vmem>>, vector<32x1xf32>
      tpu.vector_store %arg4[%c0_17, %c0_18], %19 {strides = array<i32>} : memref<32x1xf32, #tpu.memory_space<vmem>>, vector<32x1xf32>,
    } else {
    }
    %c0 = arith.constant 0 : index
    %c0_1 = arith.constant 0 : index
    %3 = vector.load %arg2[%c0, %c0_1] : memref<32x512xf32, #tpu.memory_space<vmem>>, vector<32x512xf32>
    %c0_2 = arith.constant 0 : index
    %c0_3 = arith.constant 0 : index
    %4 = vector.load %arg3[%c0_2, %c0_3] : memref<32x1xf32, #tpu.memory_space<vmem>>, vector<32x1xf32>
    %cst = arith.constant dense<0.000000e+00> : vector<32xf32>
    %5 = vector.multi_reduction <add>, %3, %cst [1] : vector<32x512xf32> to vector<32xf32>
    %6 = vector.shape_cast %5 : vector<32xf32> to vector<32x1xf32>
    %7 = arith.addf %4, %6 : vector<32x1xf32>
    %c0_4 = arith.constant 0 : index
    %c0_5 = arith.constant 0 : index
    %8 = vector.load %arg3[%c0_4, %c0_5] : memref<32x1xf32, #tpu.memory_space<vmem>>, vector<32x1xf32>
    tpu.vector_store %arg3[%c0_4, %c0_5], %7 {strides = array<i32>} : memref<32x1xf32, #tpu.memory_space<vmem>>, vector<32x1xf32>,
    %c0_6 = arith.constant 0 : index
    %c0_7 = arith.constant 0 : index
    %9 = vector.load %arg4[%c0_6, %c0_7] : memref<32x1xf32, #tpu.memory_space<vmem>>, vector<32x1xf32>
    %cst_8 = arith.constant dense<0xFF800000> : vector<32xf32>
    %10 = vector.multi_reduction <maximumf>, %3, %cst_8 [1] : vector<32x512xf32> to vector<32xf32>
    %11 = vector.shape_cast %10 : vector<32xf32> to vector<32x1xf32>
    %12 = arith.maximumf %9, %11 : vector<32x1xf32>
    %c0_9 = arith.constant 0 : index
    %c0_10 = arith.constant 0 : index
    %13 = vector.load %arg4[%c0_9, %c0_10] : memref<32x1xf32, #tpu.memory_space<vmem>>, vector<32x1xf32>
    tpu.vector_store %arg4[%c0_9, %c0_10], %12 {strides = array<i32>} : memref<32x1xf32, #tpu.memory_space<vmem>>, vector<32x1xf32>,
    %c0_i32_11 = arith.constant 0 : i32
    %14 = arith.cmpi eq, %arg1, %c0_i32_11 : i32
    %15 = arith.extui %14 : i1 to i32
    %c0_i32_12 = arith.constant 0 : i32
    %16 = arith.cmpi ne, %15, %c0_i32_12 : i32
    scf.if %16 {
      %c0_13 = arith.constant 0 : index
      %c0_14 = arith.constant 0 : index
      %17 = vector.load %arg3[%c0_13, %c0_14] : memref<32x1xf32, #tpu.memory_space<vmem>>, vector<32x1xf32>
      %cst_15 = arith.constant 0.001953125 : f32
      %18 = vector.broadcast %cst_15 : f32 to vector<32x1xf32>
      %19 = arith.mulf %17, %18 : vector<32x1xf32>
      %c0_16 = arith.constant 0 : index
      %c0_17 = arith.constant 0 : index
      %20 = vector.load %arg3[%c0_16, %c0_17] : memref<32x1xf32, #tpu.memory_space<vmem>>, vector<32x1xf32>
      tpu.vector_store %arg3[%c0_16, %c0_17], %19 {strides = array<i32>} : memref<32x1xf32, #tpu.memory_space<vmem>>, vector<32x1xf32>,
    } else {
    }
    return
  }
  func.func @transform_0(%arg0: i32, %arg1: i32) -> (i32, i32) {
    %c0_i32 = arith.constant 0 : i32
    return %arg0, %arg1 : i32, i32
  }
  func.func @transform_1(%arg0: i32, %arg1: i32) -> (i32, i32) {
    %c0_i32 = arith.constant 0 : i32
    %c0_i32_0 = arith.constant 0 : i32
    return %arg0, %c0_i32 : i32, i32
  }
  func.func @transform_2(%arg0: i32, %arg1: i32) -> (i32, i32) {
    %c0_i32 = arith.constant 0 : i32
    %c0_i32_0 = arith.constant 0 : i32
    return %arg0, %c0_i32 : i32, i32
  }
}

module attributes {stable_mosaic.version = 11 : i64} {
  func.func @_scale_kernel(%arg0: i32, %arg1: i32, %arg2: memref<32x512xf32, #tpu.memory_space<vmem>>, %arg3: memref<32x1xf32, #tpu.memory_space<vmem>>, %arg4: memref<32x512xf32, #tpu.memory_space<vmem>>) attributes {dimension_semantics = [#tpu.dimension_semantics<parallel>, #tpu.dimension_semantics<parallel>], iteration_bounds = array<i64: 2, 1>, scalar_prefetch = 0 : i64, scratch_operands = 0 : i64, tpu.core_type = #tpu.core_type<tc>, window_params = [{transform_indices = @transform_0, window_bounds = array<i64: 32, 512>}, {transform_indices = @transform_1, window_bounds = array<i64: 32, 1>}, {transform_indices = @transform_2, window_bounds = array<i64: 32, 512>}]} {
    %c0 = arith.constant 0 : index
    %c0_0 = arith.constant 0 : index
    %0 = vector.load %arg2[%c0, %c0_0] : memref<32x512xf32, #tpu.memory_space<vmem>>, vector<32x512xf32>
    %c0_1 = arith.constant 0 : index
    %c0_2 = arith.constant 0 : index
    %1 = vector.load %arg3[%c0_1, %c0_2] : memref<32x1xf32, #tpu.memory_space<vmem>>, vector<32x1xf32>
    %2 = vector.broadcast %1 : vector<32x1xf32> to vector<32x512xf32>
    %3 = arith.mulf %0, %2 : vector<32x512xf32>
    %c0_3 = arith.constant 0 : index
    %c0_4 = arith.constant 0 : index
    %4 = vector.load %arg4[%c0_3, %c0_4] : memref<32x512xf32, #tpu.memory_space<vmem>>, vector<32x512xf32>
    tpu.vector_store %arg4[%c0_3, %c0_4], %3 {strides = array<i32>} : memref<32x512xf32, #tpu.memory_space<vmem>>, vector<32x512xf32>,
    return
  }
  func.func @transform_0(%arg0: i32, %arg1: i32) -> (i32, i32) {
    %c0_i32 = arith.constant 0 : i32
    return %arg0, %arg1 : i32, i32
  }
  func.func @transform_1(%arg0: i32, %arg1: i32) -> (i32, i32) {
    %c0_i32 = arith.constant 0 : i32
    %c0_i32_0 = arith.constant 0 : i32
    return %arg0, %c0_i32 : i32, i32
  }
  func.func @transform_2(%arg0: i32, %arg1: i32) -> (i32, i32) {
    %c0_i32 = arith.constant 0 : i32
    return %arg0, %arg1 : i32, i32
  }
}

</mosaic_0001>

<llo_original>
// kernel: _channel_attention_3d.2
$region0: #{_channel_attention_3d.2}
  #allocation0 [shape = 'u32[]', space=smem, size = 0x4, offset = 0x4, fixed_abs, tag = 'smem constant byte address 0x4 - core index']
  #allocation1 [shape = 'u32[144,128]{1,0:T(1,128)}', space=vmem, size = 0x12000, scoped, tag = 'internal scratch']
  %s0 = inlined_call_operand.vmem [shape: f32[64,512], index: 0, kind: input, shape index: {}]
  %s1 = inlined_call_operand.vmem [shape: f32[64,1], index: 1, kind: output, shape index: {0}]
  %s2 = inlined_call_operand.vmem [shape: f32[64,1], index: 2, kind: output, shape index: {1}]
  %3 = xla_tuple %s1, %s2
  %s4 = sld [smem:[#allocation0]]
  $region53: #{_channel_attention_3d.2} parent=0
    _
  %s6 = ssub.s32 1, %s4
  %s7 = scalar_select 0, %s6, %s4
  loop: start=0, step=1, limit=4
  $region2: #{_channel_attention_3d.2} parent=0 // loop_pre_header
    _
  $region3: #{_channel_attention_3d.2} parent=0 // loop_header
    %s9 = sphi 0, %s13
    %p10 = scmp.ge.s32.totalorder %s9, 4
    %s16 = sphi 0, %s28
    %s17 = sphi 0, %s24
    %s18 = sphi 0, %s16
    %s19 = sphi 0, %s17
    %s20 = sphi 0, %s18
    %s21 = sphi 0, %s19
    %s33 = sphi 0, %s35
    %s36 = sphi 0, %s33
    %s37 = sphi 0, %s36
    %s53 = sphi 0, %s37
    %s59 = sphi 0, %s61
    %s62 = sphi 0, %s59
    %s63 = sphi 0, %s62
    %s79 = sphi 0, %s63
    %s85 = sphi 0, %s87
    %s88 = sphi 0, %s85
    %s89 = sphi 0, %s88
    %s105 = sphi 0, %s89
  $region4: #{_channel_attention_3d.2} parent=0 // loop_header_branch
    %12 = sbr.rel (%p10) target = $region8
  $region5: #{_channel_attention_3d.2} parent=0 // loop_body
    %s14 = ssub.s32 %s9, 1
    %s15 = ssub.s32 %s9, 2
    %s22 = sadd.s32 1, %s17
    %p23 = scmp.ge.s32.totalorder %s22, 1
    %s24 = scalar_select %p23, 0, %s22
    %s25 = sadd.s32 1, %s16
    %s26 = scalar_select %p23, %s25, %s16
    %p27 = scmp.ge.s32.totalorder %s26, 2
    %s28 = scalar_select %p27, 0, %s26
    %s29 = ssub.s32 %s16, %s28
    %s30 = ssub.s32 %s17, %s24
    %s31 = sor.u32 %s29, %s30
    %p32 = scmp.eq.s32.totalorder %s31, 0
    %s34 = sadd.s32 %s33, 1
    %s35 = scalar_select %p32, %s33, %s34
    %p38 = pneg %p32
    %p39 = scmp.eq.s32.totalorder %s9, 1
    %p40 = por %p38, %p39
    %p41 = scmp.ne.s32.totalorder %s33, %s36
    %p42 = scmp.eq.s32.totalorder %s9, 0
    %p43 = por %p41, %p42
    %p44 = scmp.ne.s32.totalorder %s33, %s36
    %p45 = scmp.eq.s32.totalorder %s14, 1
    %p46 = por %p44, %p45
    %p47 = scmp.ne.s32.totalorder %s36, %s37
    %p48 = scmp.eq.s32.totalorder %s14, 0
    %p49 = por %p47, %p48
    %p50 = scmp.ne.s32.totalorder %s36, %s37
    %p51 = scmp.eq.s32.totalorder %s15, 1
    %p52 = por %p50, %p51
    %p54 = scmp.ne.s32.totalorder %s37, %s53
    %p55 = scmp.eq.s32.totalorder %s15, 0
    %p56 = por %p54, %p55
    %s57 = ssub.s32 %s16, %s28
    %p58 = scmp.eq.s32.totalorder %s57, 0
    %s60 = sadd.s32 %s59, 1
    %s61 = scalar_select %p58, %s59, %s60
    %p64 = pneg %p58
    %p65 = scmp.eq.s32.totalorder %s9, 1
    %p66 = por %p64, %p65
    %p67 = scmp.ne.s32.totalorder %s59, %s62
    %p68 = scmp.eq.s32.totalorder %s9, 0
    %p69 = por %p67, %p68
    %p70 = scmp.ne.s32.totalorder %s59, %s62
    %p71 = scmp.eq.s32.totalorder %s14, 1
    %p72 = por %p70, %p71
    %p73 = scmp.ne.s32.totalorder %s62, %s63
    %p74 = scmp.eq.s32.totalorder %s14, 0
    %p75 = por %p73, %p74
    %p76 = scmp.ne.s32.totalorder %s62, %s63
    %p77 = scmp.eq.s32.totalorder %s15, 1
    %p78 = por %p76, %p77
    %p80 = scmp.ne.s32.totalorder %s63, %s79
    %p81 = scmp.eq.s32.totalorder %s15, 0
    %p82 = por %p80, %p81
    %s83 = ssub.s32 %s16, %s28
    %p84 = scmp.eq.s32.totalorder %s83, 0
    %s86 = sadd.s32 %s85, 1
    %s87 = scalar_select %p84, %s85, %s86
    %p90 = pneg %p84
    %p91 = scmp.eq.s32.totalorder %s9, 1
    %p92 = por %p90, %p91
    %p93 = scmp.ne.s32.totalorder %s85, %s88
    %p94 = scmp.eq.s32.totalorder %s9, 0
    %p95 = por %p93, %p94
    %p96 = scmp.ne.s32.totalorder %s85, %s88
    %p97 = scmp.eq.s32.totalorder %s14, 1
    %p98 = por %p96, %p97
    %p99 = scmp.ne.s32.totalorder %s88, %s89
    %p100 = scmp.eq.s32.totalorder %s14, 0
    %p101 = por %p99, %p100
    %p102 = scmp.ne.s32.totalorder %s88, %s89
    %p103 = scmp.eq.s32.totalorder %s15, 1
    %p104 = por %p102, %p103
    %p106 = scmp.ne.s32.totalorder %s89, %s105
    %p107 = scmp.eq.s32.totalorder %s15, 0
    %p108 = por %p106, %p107
    %p109 = scmp.le.s32.totalorder 1, %s9
    %p110 = scmp.lt.s32.totalorder %s9, 3
    %p111 = pnand %p109, %p110
    %p112 = pneg %p111
    // Predicated region
    $region9: #{_channel_attention_3d.2} parent=5 // pred_check
      _
    $region10: #{_channel_attention_3d.2} parent=5 // pred_check_branch
      %114 = sbr.rel (%p111) target = $region12
    $region11: #{_channel_attention_3d.2} parent=5 // pred_region
      %s115 = ssub.s32 %s9, 1
    $region12: #{_channel_attention_3d.2} parent=5 // pred_fallthru
      _
    %p116 = scmp.lt.s32.totalorder %s9, 2
    // Predicated region
    $region13: #{_channel_attention_3d.2} parent=5 // pred_check
      %p117 = pneg %p116
    $region14: #{_channel_attention_3d.2} parent=5 // pred_check_branch
      %119 = sbr.rel (%p117) target = $region16
    $region15: #{_channel_attention_3d.2} parent=5 // pred_region
      // Predicated region
      $region17: #{_channel_attention_3d.2} parent=15 // pred_check
        %p120 = pneg %p43
      $region18: #{_channel_attention_3d.2} parent=15 // pred_check_branch
        %122 = sbr.rel (%p120) target = $region20
      $region19: #{_channel_attention_3d.2} parent=15 // pred_region
        %s123 = smul.u32 4, %s16
        %s124 = smul.u32 4, %s17
        %p125 = scmp.lt.s32.totalorder %s123, 7
        %s126 = scalar_select %p125, %s123, 7
        %p127 = scmp.lt.s32.totalorder %s124, 3
        %s128 = scalar_select %p127, %s124, 3
        %s129 = smul.addr %s126, 4
        %s130 = sadd.s32 %s128, %s129
        %s131 = smul.addr %s130, 8
        %s132 = scalar_lea.vmem %s0, %s131
        %s133 = smul.u32 4, %s16
        %s134 = smul.u32 4, %s17
      $region20: #{_channel_attention_3d.2} parent=15 // pred_fallthru
        _
    $region16: #{_channel_attention_3d.2} parent=5 // pred_fallthru
      _
    %p135 = scmp.le.s32.totalorder 1, %s9
    %p136 = scmp.lt.s32.totalorder %s9, 3
    %p137 = pnand %p135, %p136
    %p138 = pneg %p137
    // Predicated region
    $region21: #{_channel_attention_3d.2} parent=5 // pred_check
      _
    $region22: #{_channel_attention_3d.2} parent=5 // pred_check_branch
      %140 = sbr.rel (%p137) target = $region24
    $region23: #{_channel_attention_3d.2} parent=5 // pred_region
      %s141 = ssub.s32 %s9, 1
      %s142 = smul.u32 4, %s18
      %s143 = smul.u32 4, %s19
      %p144 = scmp.lt.s32.totalorder %s142, 7
      %s145 = scalar_select %p144, %s142, 7
      %p146 = scmp.lt.s32.totalorder %s143, 3
      %s147 = scalar_select %p146, %s143, 3
      %s148 = smul.addr %s145, 4
      %s149 = sadd.s32 %s147, %s148
      %s150 = smul.addr %s149, 8
      %s151 = scalar_lea.vmem %s0, %s150
      %p152 = pneg %p49
      %p153 = pneg %p46
      %p154 = pneg %p75
      %p155 = pneg %p72
      %s156 = smul.u32 4, %s18
      %p157 = scmp.lt.s32.totalorder %s156, 7
      %s158 = scalar_select %p157, %s156, 7
      %s159 = smul.addr %s158, 8
      %s160 = scalar_lea.vmem %s1, %s159
      %p161 = pneg %p101
      %p162 = pneg %p98
      %s163 = smul.u32 4, %s18
      %p164 = scmp.lt.s32.totalorder %s163, 7
      %s165 = scalar_select %p164, %s163, 7
      %s166 = smul.addr %s165, 8
      %s167 = scalar_lea.vmem %s2, %s166
      %s168 = smul.u32 4, %s18
      %s169 = smul.u32 4, %s19
      %p170 = scmp.lt.s32.totalorder %s168, 7
      %s171 = scalar_select %p170, %s168, 7
      %p172 = scmp.lt.s32.totalorder %s169, 3
      %s173 = scalar_select %p172, %s169, 3
      %s174 = smul.addr %s171, 4
      %s175 = sadd.s32 %s173, %s174
      %s176 = smul.addr %s175, 8
      %s177 = scalar_lea.vmem %s0, %s176
      %s178 = smul.u32 4, %s18
      %s179 = smul.u32 4, %s19
      %s180 = smul.u32 4, %s18
      %p181 = scmp.lt.s32.totalorder %s180, 7
      %s182 = scalar_select %p181, %s180, 7
      %s183 = smul.addr %s182, 8
      %s184 = scalar_lea.vmem %s1, %s183
      %s185 = smul.u32 4, %s18
      %s186 = smul.u32 4, %s18
      %p187 = scmp.lt.s32.totalorder %s186, 7
      %s188 = scalar_select %p187, %s186, 7
      %s189 = smul.addr %s188, 8
      %s190 = scalar_lea.vmem %s2, %s189
      %s191 = smul.u32 4, %s18
      %p192 = scmp.eq.s32.totalorder %s19, 0
      // Predicated region
      $region25: #{_channel_attention_3d.2} parent=23 // pred_check
        %p193 = pneg %p192
      $region26: #{_channel_attention_3d.2} parent=23 // pred_check_branch
        %195 = sbr.rel (%p193) target = $region28
      $region27: #{_channel_attention_3d.2} parent=23 // pred_region
        %vm196 = vcmask 7168
        %197 = vst.msk [vmem:[%s184] sm:$0xff] %vm196, 0.0
        %198 = vst.msk [vmem:[%s184 + $0x8] sm:$0xff] %vm196, 0.0
        %199 = vst.msk [vmem:[%s184 + $0x10] sm:$0xff] %vm196, 0.0
        %200 = vst.msk [vmem:[%s184 + $0x18] sm:$0xff] %vm196, 0.0
        %201 = vst.msk [vmem:[%s190] sm:$0xff] %vm196, -inf
        %202 = vst.msk [vmem:[%s190 + $0x8] sm:$0xff] %vm196, -inf
        %203 = vst.msk [vmem:[%s190 + $0x10] sm:$0xff] %vm196, -inf
        %204 = vst.msk [vmem:[%s190 + $0x18] sm:$0xff] %vm196, -inf
      $region28: #{_channel_attention_3d.2} parent=23 // pred_fallthru
        _
      %v205 = vld [vmem:[%s177] sm:$0xff]
      %v206 = vld [vmem:[%s177 + $0x8] sm:$0xff]
      %v207 = vld [vmem:[%s177 + $0x10] sm:$0xff]
      %v208 = vld [vmem:[%s177 + $0x18] sm:$0xff]
      %v209 = vld [vmem:[%s177 + $0x20] sm:$0xff]
      %v210 = vld [vmem:[%s177 + $0x28] sm:$0xff]
      %v211 = vld [vmem:[%s177 + $0x30] sm:$0xff]
      %v212 = vld [vmem:[%s177 + $0x38] sm:$0xff]
      %v213 = vld [vmem:[%s177 + $0x40] sm:$0xff]
      %v214 = vld [vmem:[%s177 + $0x48] sm:$0xff]
      %v215 = vld [vmem:[%s177 + $0x50] sm:$0xff]
      %v216 = vld [vmem:[%s177 + $0x58] sm:$0xff]
      %v217 = vld [vmem:[%s177 + $0x60] sm:$0xff]
      %v218 = vld [vmem:[%s177 + $0x68] sm:$0xff]
      %v219 = vld [vmem:[%s177 + $0x70] sm:$0xff]
      %v220 = vld [vmem:[%s177 + $0x78] sm:$0xff]
      %v221 = vld [vmem:[%s184] sm:$0xff]
      %v222 = vld [vmem:[%s184 + $0x8] sm:$0xff]
      %v223 = vld [vmem:[%s184 + $0x10] sm:$0xff]
      %v224 = vld [vmem:[%s184 + $0x18] sm:$0xff]
      %v225 = vadd.f32 %v205, %v206
      %v226 = vadd.f32 %v225, %v207
      %v227 = vadd.f32 %v226, %v208
      %228 = vadd.xlane.f32.xlu0 %v227
      %v229 = vpop.xlane.xlu0 %228
      %v230 = vadd.f32 %v209, %v210
      %v231 = vadd.f32 %v230, %v211
      %v232 = vadd.f32 %v231, %v212
      %233 = vadd.xlane.f32.xlu0 %v232
      %v234 = vpop.xlane.xlu0 %233
      %v235 = vadd.f32 %v213, %v214
      %v236 = vadd.f32 %v235, %v215
      %v237 = vadd.f32 %v236, %v216
      %238 = vadd.xlane.f32.xlu0 %v237
      %v239 = vpop.xlane.xlu0 %238
      %v240 = vadd.f32 %v217, %v218
      %v241 = vadd.f32 %v240, %v219
      %v242 = vadd.f32 %v241, %v220
      %243 = vadd.xlane.f32.xlu0 %v242
      %v244 = vpop.xlane.xlu0 %243
      %v245 = vadd.f32 %v221, %v229
      %v246 = vadd.f32 %v222, %v234
      %v247 = vadd.f32 %v223, %v239
      %v248 = vadd.f32 %v224, %v244
      %vm249 = vcmask 7168
      %250 = vst.msk [vmem:[%s184] sm:$0xff] %vm249, %v245
      %251 = vst.msk [vmem:[%s184 + $0x8] sm:$0xff] %vm249, %v246
      %252 = vst.msk [vmem:[%s184 + $0x10] sm:$0xff] %vm249, %v247
      %253 = vst.msk [vmem:[%s184 + $0x18] sm:$0xff] %vm249, %v248
      %v254 = vld [vmem:[%s190] sm:$0xff]
      %v255 = vld [vmem:[%s190 + $0x8] sm:$0xff]
      %v256 = vld [vmem:[%s190 + $0x10] sm:$0xff]
      %v257 = vld [vmem:[%s190 + $0x18] sm:$0xff]
      %v258 = vmax.f32 %v205, %v206
      %v259 = vmax.f32 %v258, %v207
      %v260 = vmax.f32 %v259, %v208
      %261 = vmax.xlane.f32.xlu0 %v260
      %v262 = vpop.xlane.xlu0 %261
      %v263 = vmax.f32 %v209, %v210
      %v264 = vmax.f32 %v263, %v211
      %v265 = vmax.f32 %v264, %v212
      %266 = vmax.xlane.f32.xlu0 %v265
      %v267 = vpop.xlane.xlu0 %266
      %v268 = vmax.f32 %v213, %v214
      %v269 = vmax.f32 %v268, %v215
      %v270 = vmax.f32 %v269, %v216
      %271 = vmax.xlane.f32.xlu0 %v270
      %v272 = vpop.xlane.xlu0 %271
      %v273 = vmax.f32 %v217, %v218
      %v274 = vmax.f32 %v273, %v219
      %v275 = vmax.f32 %v274, %v220
      %276 = vmax.xlane.f32.xlu0 %v275
      %v277 = vpop.xlane.xlu0 %276
      %v278 = vmax.f32 %v254, %v262
      %v279 = vmax.f32 %v255, %v267
      %v280 = vmax.f32 %v256, %v272
      %v281 = vmax.f32 %v257, %v277
      %282 = vst.msk [vmem:[%s190] sm:$0xff] %vm249, %v278
      %283 = vst.msk [vmem:[%s190 + $0x8] sm:$0xff] %vm249, %v279
      %284 = vst.msk [vmem:[%s190 + $0x10] sm:$0xff] %vm249, %v280
      %285 = vst.msk [vmem:[%s190 + $0x18] sm:$0xff] %vm249, %v281
      // Predicated region
      $region29: #{_channel_attention_3d.2} parent=23 // pred_check
        %p286 = pneg %p192
      $region30: #{_channel_attention_3d.2} parent=23 // pred_check_branch
        %288 = sbr.rel (%p286) target = $region32
      $region31: #{_channel_attention_3d.2} parent=23 // pred_region
        %v289 = vld [vmem:[%s184] sm:$0xff]
        %v290 = vld [vmem:[%s184 + $0x8] sm:$0xff]
        %v291 = vld [vmem:[%s184 + $0x10] sm:$0xff]
        %v292 = vld [vmem:[%s184 + $0x18] sm:$0xff]
        %v293 = vmul.f32 %v289, 0.001953125
        %v294 = vmul.f32 %v290, 0.001953125
        %v295 = vmul.f32 %v291, 0.001953125
        %v296 = vmul.f32 %v292, 0.001953125
        %297 = vst.msk [vmem:[%s184] sm:$0xff] %vm249, %v293
        %298 = vst.msk [vmem:[%s184 + $0x8] sm:$0xff] %vm249, %v294
        %299 = vst.msk [vmem:[%s184 + $0x10] sm:$0xff] %vm249, %v295
        %300 = vst.msk [vmem:[%s184 + $0x18] sm:$0xff] %vm249, %v296
      $region32: #{_channel_attention_3d.2} parent=23 // pred_fallthru
        _
      %s301 = smul.u32 4, %s18
      %p302 = scmp.lt.s32.totalorder %s301, 7
      %s303 = scalar_select %p302, %s301, 7
      %s304 = smul.addr %s303, 8
      %s305 = scalar_lea.vmem %s1, %s304
      %s306 = smul.u32 4, %s18
      %p307 = scmp.lt.s32.totalorder %s306, 7
      %s308 = scalar_select %p307, %s306, 7
      %s309 = smul.addr %s308, 8
      %s310 = scalar_lea.vmem %s2, %s309
      // Predicated region
      $region33: #{_channel_attention_3d.2} parent=23 // pred_check
        %p311 = pneg %p72
      $region34: #{_channel_attention_3d.2} parent=23 // pred_check_branch
        %313 = sbr.rel (%p311) target = $region36
      $region35: #{_channel_attention_3d.2} parent=23 // pred_region
        %s314 = smul.u32 4, %s18
      $region36: #{_channel_attention_3d.2} parent=23 // pred_fallthru
        _
      // Predicated region
      $region37: #{_channel_attention_3d.2} parent=23 // pred_check
        %p315 = pneg %p98
      $region38: #{_channel_attention_3d.2} parent=23 // pred_check_branch
        %317 = sbr.rel (%p315) target = $region40
      $region39: #{_channel_attention_3d.2} parent=23 // pred_region
        %s318 = smul.u32 4, %s18
      $region40: #{_channel_attention_3d.2} parent=23 // pred_fallthru
        _
    $region24: #{_channel_attention_3d.2} parent=5 // pred_fallthru
      _
    %p319 = scmp.le.s32.totalorder 2, %s9
    // Predicated region
    $region41: #{_channel_attention_3d.2} parent=5 // pred_check
      %p320 = pneg %p319
    $region42: #{_channel_attention_3d.2} parent=5 // pred_check_branch
      %322 = sbr.rel (%p320) target = $region44
    $region43: #{_channel_attention_3d.2} parent=5 // pred_region
      %s323 = ssub.s32 %s9, 2
      // Predicated region
      $region45: #{_channel_attention_3d.2} parent=43 // pred_check
        %p324 = pneg %p78
      $region46: #{_channel_attention_3d.2} parent=43 // pred_check_branch
        %326 = sbr.rel (%p324) target = $region48
      $region47: #{_channel_attention_3d.2} parent=43 // pred_region
        %s327 = smul.u32 4, %s20
        %p328 = scmp.lt.s32.totalorder %s327, 7
        %s329 = scalar_select %p328, %s327, 7
        %s330 = smul.addr %s329, 8
        %s331 = scalar_lea.vmem %s1, %s330
      $region48: #{_channel_attention_3d.2} parent=43 // pred_fallthru
        _
      // Predicated region
      $region49: #{_channel_attention_3d.2} parent=43 // pred_check
        %p332 = pneg %p104
      $region50: #{_channel_attention_3d.2} parent=43 // pred_check_branch
        %334 = sbr.rel (%p332) target = $region52
      $region51: #{_channel_attention_3d.2} parent=43 // pred_region
        %s335 = smul.u32 4, %s20
        %p336 = scmp.lt.s32.totalorder %s335, 7
        %s337 = scalar_select %p336, %s335, 7
        %s338 = smul.addr %s337, 8
        %s339 = scalar_lea.vmem %s2, %s338
      $region52: #{_channel_attention_3d.2} parent=43 // pred_fallthru
        _
    $region44: #{_channel_attention_3d.2} parent=5 // pred_fallthru
      _
  $region6: #{_channel_attention_3d.2} parent=0 // loop_footer
    %s13 = sadd.s32 1, %s9
  $region7: #{_channel_attention_3d.2} parent=0 // loop_footer_branch
    %8 = sbr.rel target = $region3
  $region8: #{_channel_attention_3d.2} parent=0 // loop_exit
    _

// kernel: _channel_attention_3d.3
$region0: #{_channel_attention_3d.3}
  #allocation0 [shape = 'u32[]', space=smem, size = 0x4, offset = 0x4, fixed_abs, tag = 'smem constant byte address 0x4 - core index']
  #allocation1 [shape = 'u32[144,128]{1,0:T(1,128)}', space=vmem, size = 0x12000, scoped, tag = 'internal scratch']
  %s0 = inlined_call_operand.vmem [shape: f32[64,512], index: 0, kind: input, shape index: {}, may-alias: {0,2}]
  %s1 = inlined_call_operand.vmem [shape: f32[64,1], index: 1, kind: input, shape index: {}]
  %s2 = inlined_call_operand.vmem [shape: f32[64,512], index: 2, kind: output, shape index: {}, may-alias: {0,2}]
  %s3 = sld [smem:[#allocation0]]
  $region41: #{_channel_attention_3d.3} parent=0
    _
  %s5 = ssub.s32 1, %s3
  %s6 = scalar_select 0, %s5, %s3
  loop: start=0, step=1, limit=4
  $region2: #{_channel_attention_3d.3} parent=0 // loop_pre_header
    _
  $region3: #{_channel_attention_3d.3} parent=0 // loop_header
    %s8 = sphi 0, %s12
    %p9 = scmp.ge.s32.totalorder %s8, 4
    %s15 = sphi 0, %s27
    %s16 = sphi 0, %s23
    %s17 = sphi 0, %s15
    %s18 = sphi 0, %s16
    %s19 = sphi 0, %s17
    %s20 = sphi 0, %s18
    %s32 = sphi 0, %s34
    %s35 = sphi 0, %s32
    %s36 = sphi 0, %s35
    %s52 = sphi 0, %s36
    %s58 = sphi 0, %s60
    %s61 = sphi 0, %s58
    %s62 = sphi 0, %s61
    %s78 = sphi 0, %s62
    %s86 = sphi 0, %s88
    %s89 = sphi 0, %s86
    %s90 = sphi 0, %s89
    %s106 = sphi 0, %s90
  $region4: #{_channel_attention_3d.3} parent=0 // loop_header_branch
    %11 = sbr.rel (%p9) target = $region8
  $region5: #{_channel_attention_3d.3} parent=0 // loop_body
    %s13 = ssub.s32 %s8, 1
    %s14 = ssub.s32 %s8, 2
    %s21 = sadd.s32 1, %s16
    %p22 = scmp.ge.s32.totalorder %s21, 1
    %s23 = scalar_select %p22, 0, %s21
    %s24 = sadd.s32 1, %s15
    %s25 = scalar_select %p22, %s24, %s15
    %p26 = scmp.ge.s32.totalorder %s25, 2
    %s27 = scalar_select %p26, 0, %s25
    %s28 = ssub.s32 %s15, %s27
    %s29 = ssub.s32 %s16, %s23
    %s30 = sor.u32 %s28, %s29
    %p31 = scmp.eq.s32.totalorder %s30, 0
    %s33 = sadd.s32 %s32, 1
    %s34 = scalar_select %p31, %s32, %s33
    %p37 = pneg %p31
    %p38 = scmp.eq.s32.totalorder %s8, 1
    %p39 = por %p37, %p38
    %p40 = scmp.ne.s32.totalorder %s32, %s35
    %p41 = scmp.eq.s32.totalorder %s8, 0
    %p42 = por %p40, %p41
    %p43 = scmp.ne.s32.totalorder %s32, %s35
    %p44 = scmp.eq.s32.totalorder %s13, 1
    %p45 = por %p43, %p44
    %p46 = scmp.ne.s32.totalorder %s35, %s36
    %p47 = scmp.eq.s32.totalorder %s13, 0
    %p48 = por %p46, %p47
    %p49 = scmp.ne.s32.totalorder %s35, %s36
    %p50 = scmp.eq.s32.totalorder %s14, 1
    %p51 = por %p49, %p50
    %p53 = scmp.ne.s32.totalorder %s36, %s52
    %p54 = scmp.eq.s32.totalorder %s14, 0
    %p55 = por %p53, %p54
    %s56 = ssub.s32 %s15, %s27
    %p57 = scmp.eq.s32.totalorder %s56, 0
    %s59 = sadd.s32 %s58, 1
    %s60 = scalar_select %p57, %s58, %s59
    %p63 = pneg %p57
    %p64 = scmp.eq.s32.totalorder %s8, 1
    %p65 = por %p63, %p64
    %p66 = scmp.ne.s32.totalorder %s58, %s61
    %p67 = scmp.eq.s32.totalorder %s8, 0
    %p68 = por %p66, %p67
    %p69 = scmp.ne.s32.totalorder %s58, %s61
    %p70 = scmp.eq.s32.totalorder %s13, 1
    %p71 = por %p69, %p70
    %p72 = scmp.ne.s32.totalorder %s61, %s62
    %p73 = scmp.eq.s32.totalorder %s13, 0
    %p74 = por %p72, %p73
    %p75 = scmp.ne.s32.totalorder %s61, %s62
    %p76 = scmp.eq.s32.totalorder %s14, 1
    %p77 = por %p75, %p76
    %p79 = scmp.ne.s32.totalorder %s62, %s78
    %p80 = scmp.eq.s32.totalorder %s14, 0
    %p81 = por %p79, %p80
    %s82 = ssub.s32 %s15, %s27
    %s83 = ssub.s32 %s16, %s23
    %s84 = sor.u32 %s82, %s83
    %p85 = scmp.eq.s32.totalorder %s84, 0
    %s87 = sadd.s32 %s86, 1
    %s88 = scalar_select %p85, %s86, %s87
    %p91 = pneg %p85
    %p92 = scmp.eq.s32.totalorder %s8, 1
    %p93 = por %p91, %p92
    %p94 = scmp.ne.s32.totalorder %s86, %s89
    %p95 = scmp.eq.s32.totalorder %s8, 0
    %p96 = por %p94, %p95
    %p97 = scmp.ne.s32.totalorder %s86, %s89
    %p98 = scmp.eq.s32.totalorder %s13, 1
    %p99 = por %p97, %p98
    %p100 = scmp.ne.s32.totalorder %s89, %s90
    %p101 = scmp.eq.s32.totalorder %s13, 0
    %p102 = por %p100, %p101
    %p103 = scmp.ne.s32.totalorder %s89, %s90
    %p104 = scmp.eq.s32.totalorder %s14, 1
    %p105 = por %p103, %p104
    %p107 = scmp.ne.s32.totalorder %s90, %s106
    %p108 = scmp.eq.s32.totalorder %s14, 0
    %p109 = por %p107, %p108
    %p110 = scmp.le.s32.totalorder 1, %s8
    %p111 = scmp.lt.s32.totalorder %s8, 3
    %p112 = pnand %p110, %p111
    %p113 = pneg %p112
    // Predicated region
    $region9: #{_channel_attention_3d.3} parent=5 // pred_check
      _
    $region10: #{_channel_attention_3d.3} parent=5 // pred_check_branch
      %115 = sbr.rel (%p112) target = $region12
    $region11: #{_channel_attention_3d.3} parent=5 // pred_region
      %s116 = ssub.s32 %s8, 1
    $region12: #{_channel_attention_3d.3} parent=5 // pred_fallthru
      _
    %p117 = scmp.lt.s32.totalorder %s8, 2
    // Predicated region
    $region13: #{_channel_attention_3d.3} parent=5 // pred_check
      %p118 = pneg %p117
    $region14: #{_channel_attention_3d.3} parent=5 // pred_check_branch
      %120 = sbr.rel (%p118) target = $region16
    $region15: #{_channel_attention_3d.3} parent=5 // pred_region
      // Predicated region
      $region17: #{_channel_attention_3d.3} parent=15 // pred_check
        %p121 = pneg %p42
      $region18: #{_channel_attention_3d.3} parent=15 // pred_check_branch
        %123 = sbr.rel (%p121) target = $region20
      $region19: #{_channel_attention_3d.3} parent=15 // pred_region
        %s124 = smul.u32 4, %s15
        %s125 = smul.u32 4, %s16
        %p126 = scmp.lt.s32.totalorder %s124, 7
        %s127 = scalar_select %p126, %s124, 7
        %p128 = scmp.lt.s32.totalorder %s125, 3
        %s129 = scalar_select %p128, %s125, 3
        %s130 = smul.addr %s127, 4
        %s131 = sadd.s32 %s129, %s130
        %s132 = smul.addr %s131, 8
        %s133 = scalar_lea.vmem %s0, %s132
        %s134 = smul.u32 4, %s15
        %s135 = smul.u32 4, %s16
      $region20: #{_channel_attention_3d.3} parent=15 // pred_fallthru
        _
      // Predicated region
      $region21: #{_channel_attention_3d.3} parent=15 // pred_check
        %p136 = pneg %p68
      $region22: #{_channel_attention_3d.3} parent=15 // pred_check_branch
        %138 = sbr.rel (%p136) target = $region24
      $region23: #{_channel_attention_3d.3} parent=15 // pred_region
        %s139 = smul.u32 4, %s15
        %p140 = scmp.lt.s32.totalorder %s139, 7
        %s141 = scalar_select %p140, %s139, 7
        %s142 = smul.addr %s141, 8
        %s143 = scalar_lea.vmem %s1, %s142
        %s144 = smul.u32 4, %s15
      $region24: #{_channel_attention_3d.3} parent=15 // pred_fallthru
        _
    $region16: #{_channel_attention_3d.3} parent=5 // pred_fallthru
      _
    %p145 = scmp.le.s32.totalorder 1, %s8
    %p146 = scmp.lt.s32.totalorder %s8, 3
    %p147 = pnand %p145, %p146
    %p148 = pneg %p147
    // Predicated region
    $region25: #{_channel_attention_3d.3} parent=5 // pred_check
      _
    $region26: #{_channel_attention_3d.3} parent=5 // pred_check_branch
      %150 = sbr.rel (%p147) target = $region28
    $region27: #{_channel_attention_3d.3} parent=5 // pred_region
      %s151 = ssub.s32 %s8, 1
      %s152 = smul.u32 4, %s17
      %s153 = smul.u32 4, %s18
      %p154 = scmp.lt.s32.totalorder %s152, 7
      %s155 = scalar_select %p154, %s152, 7
      %p156 = scmp.lt.s32.totalorder %s153, 3
      %s157 = scalar_select %p156, %s153, 3
      %s158 = smul.addr %s155, 4
      %s159 = sadd.s32 %s157, %s158
      %s160 = smul.addr %s159, 8
      %s161 = scalar_lea.vmem %s0, %s160
      %p162 = pneg %p48
      %p163 = pneg %p45
      %s164 = smul.u32 4, %s17
      %p165 = scmp.lt.s32.totalorder %s164, 7
      %s166 = scalar_select %p165, %s164, 7
      %s167 = smul.addr %s166, 8
      %s168 = scalar_lea.vmem %s1, %s167
      %p169 = pneg %p74
      %p170 = pneg %p71
      %p171 = pneg %p102
      %p172 = pneg %p99
      %s173 = smul.u32 4, %s17
      %s174 = smul.u32 4, %s18
      %p175 = scmp.lt.s32.totalorder %s173, 7
      %s176 = scalar_select %p175, %s173, 7
      %p177 = scmp.lt.s32.totalorder %s174, 3
      %s178 = scalar_select %p177, %s174, 3
      %s179 = smul.addr %s176, 4
      %s180 = sadd.s32 %s178, %s179
      %s181 = smul.addr %s180, 8
      %s182 = scalar_lea.vmem %s2, %s181
      %s183 = smul.u32 4, %s17
      %s184 = smul.u32 4, %s18
      %p185 = scmp.lt.s32.totalorder %s183, 7
      %s186 = scalar_select %p185, %s183, 7
      %p187 = scmp.lt.s32.totalorder %s184, 3
      %s188 = scalar_select %p187, %s184, 3
      %s189 = smul.addr %s186, 4
      %s190 = sadd.s32 %s188, %s189
      %s191 = smul.addr %s190, 8
      %s192 = scalar_lea.vmem %s0, %s191
      %s193 = smul.u32 4, %s17
      %s194 = smul.u32 4, %s18
      %s195 = smul.u32 4, %s17
      %p196 = scmp.lt.s32.totalorder %s195, 7
      %s197 = scalar_select %p196, %s195, 7
      %s198 = smul.addr %s197, 8
      %s199 = scalar_lea.vmem %s1, %s198
      %s200 = smul.u32 4, %s17
      %s201 = smul.u32 4, %s17
      %s202 = smul.u32 4, %s18
      %p203 = scmp.lt.s32.totalorder %s201, 7
      %s204 = scalar_select %p203, %s201, 7
      %p205 = scmp.lt.s32.totalorder %s202, 3
      %s206 = scalar_select %p205, %s202, 3
      %s207 = smul.addr %s204, 4
      %s208 = sadd.s32 %s206, %s207
      %s209 = smul.addr %s208, 8
      %s210 = scalar_lea.vmem %s2, %s209
      %s211 = smul.u32 4, %s17
      %s212 = smul.u32 4, %s18
      %v213 = vld [vmem:[%s192] sm:$0xff]
      %v214 = vld [vmem:[%s192 + $0x8] sm:$0xff]
      %v215 = vld [vmem:[%s192 + $0x10] sm:$0xff]
      %v216 = vld [vmem:[%s192 + $0x18] sm:$0xff]
      %v217 = vld [vmem:[%s192 + $0x20] sm:$0xff]
      %v218 = vld [vmem:[%s192 + $0x28] sm:$0xff]
      %v219 = vld [vmem:[%s192 + $0x30] sm:$0xff]
      %v220 = vld [vmem:[%s192 + $0x38] sm:$0xff]
      %v221 = vld [vmem:[%s192 + $0x40] sm:$0xff]
      %v222 = vld [vmem:[%s192 + $0x48] sm:$0xff]
      %v223 = vld [vmem:[%s192 + $0x50] sm:$0xff]
      %v224 = vld [vmem:[%s192 + $0x58] sm:$0xff]
      %v225 = vld [vmem:[%s192 + $0x60] sm:$0xff]
      %v226 = vld [vmem:[%s192 + $0x68] sm:$0xff]
      %v227 = vld [vmem:[%s192 + $0x70] sm:$0xff]
      %v228 = vld [vmem:[%s192 + $0x78] sm:$0xff]
      %v229 = vld [vmem:[%s199] sm:$0xff]
      %v230 = vld [vmem:[%s199 + $0x8] sm:$0xff]
      %v231 = vld [vmem:[%s199 + $0x10] sm:$0xff]
      %v232 = vld [vmem:[%s199 + $0x18] sm:$0xff]
      %234 = vset.pattern.permute.xlu0 0
      %235 = vperm.xlu0 %234, %v229
      %v236 = vpop.permute.xlu0 %235
      %239 = vset.pattern.permute.xlu0 0
      %240 = vperm.xlu0 %239, %v230
      %v241 = vpop.permute.xlu0 %240
      %244 = vset.pattern.permute.xlu0 0
      %245 = vperm.xlu0 %244, %v231
      %v246 = vpop.permute.xlu0 %245
      %249 = vset.pattern.permute.xlu0 0
      %250 = vperm.xlu0 %249, %v232
      %v251 = vpop.permute.xlu0 %250
      %v253 = vmul.f32 %v213, %v236
      %v254 = vmul.f32 %v214, %v236
      %v255 = vmul.f32 %v215, %v236
      %v256 = vmul.f32 %v216, %v236
      %v257 = vmul.f32 %v217, %v241
      %v258 = vmul.f32 %v218, %v241
      %v259 = vmul.f32 %v219, %v241
      %v260 = vmul.f32 %v220, %v241
      %v261 = vmul.f32 %v221, %v246
      %v262 = vmul.f32 %v222, %v246
      %v263 = vmul.f32 %v223, %v246
      %v264 = vmul.f32 %v224, %v246
      %v265 = vmul.f32 %v225, %v251
      %v266 = vmul.f32 %v226, %v251
      %v267 = vmul.f32 %v227, %v251
      %v268 = vmul.f32 %v228, %v251
      %269 = vst [vmem:[%s210] sm:$0xff] %v253
      %270 = vst [vmem:[%s210 + $0x8] sm:$0xff] %v254
      %271 = vst [vmem:[%s210 + $0x10] sm:$0xff] %v255
      %272 = vst [vmem:[%s210 + $0x18] sm:$0xff] %v256
      %273 = vst [vmem:[%s210 + $0x20] sm:$0xff] %v257
      %274 = vst [vmem:[%s210 + $0x28] sm:$0xff] %v258
      %275 = vst [vmem:[%s210 + $0x30] sm:$0xff] %v259
      %276 = vst [vmem:[%s210 + $0x38] sm:$0xff] %v260
      %277 = vst [vmem:[%s210 + $0x40] sm:$0xff] %v261
      %278 = vst [vmem:[%s210 + $0x48] sm:$0xff] %v262
      %279 = vst [vmem:[%s210 + $0x50] sm:$0xff] %v263
      %280 = vst [vmem:[%s210 + $0x58] sm:$0xff] %v264
      %281 = vst [vmem:[%s210 + $0x60] sm:$0xff] %v265
      %282 = vst [vmem:[%s210 + $0x68] sm:$0xff] %v266
      %283 = vst [vmem:[%s210 + $0x70] sm:$0xff] %v267
      %284 = vst [vmem:[%s210 + $0x78] sm:$0xff] %v268
      %s285 = smul.u32 4, %s17
      %s286 = smul.u32 4, %s18
      %p287 = scmp.lt.s32.totalorder %s285, 7
      %s288 = scalar_select %p287, %s285, 7
      %p289 = scmp.lt.s32.totalorder %s286, 3
      %s290 = scalar_select %p289, %s286, 3
      %s291 = smul.addr %s288, 4
      %s292 = sadd.s32 %s290, %s291
      %s293 = smul.addr %s292, 8
      %s294 = scalar_lea.vmem %s2, %s293
      // Predicated region
      $region29: #{_channel_attention_3d.3} parent=27 // pred_check
        %p295 = pneg %p99
      $region30: #{_channel_attention_3d.3} parent=27 // pred_check_branch
        %297 = sbr.rel (%p295) target = $region32
      $region31: #{_channel_attention_3d.3} parent=27 // pred_region
        %s298 = smul.u32 4, %s17
        %s299 = smul.u32 4, %s18
      $region32: #{_channel_attention_3d.3} parent=27 // pred_fallthru
        _
    $region28: #{_channel_attention_3d.3} parent=5 // pred_fallthru
      _
    %p300 = scmp.le.s32.totalorder 2, %s8
    // Predicated region
    $region33: #{_channel_attention_3d.3} parent=5 // pred_check
      %p301 = pneg %p300
    $region34: #{_channel_attention_3d.3} parent=5 // pred_check_branch
      %303 = sbr.rel (%p301) target = $region36
    $region35: #{_channel_attention_3d.3} parent=5 // pred_region
      %s304 = ssub.s32 %s8, 2
      // Predicated region
      $region37: #{_channel_attention_3d.3} parent=35 // pred_check
        %p305 = pneg %p105
      $region38: #{_channel_attention_3d.3} parent=35 // pred_check_branch
        %307 = sbr.rel (%p305) target = $region40
      $region39: #{_channel_attention_3d.3} parent=35 // pred_region
        %s308 = smul.u32 4, %s19
        %s309 = smul.u32 4, %s20
        %p310 = scmp.lt.s32.totalorder %s308, 7
        %s311 = scalar_select %p310, %s308, 7
        %p312 = scmp.lt.s32.totalorder %s309, 3
        %s313 = scalar_select %p312, %s309, 3
        %s314 = smul.addr %s311, 4
        %s315 = sadd.s32 %s313, %s314
        %s316 = smul.addr %s315, 8
        %s317 = scalar_lea.vmem %s2, %s316
      $region40: #{_channel_attention_3d.3} parent=35 // pred_fallthru
        _
    $region36: #{_channel_attention_3d.3} parent=5 // pred_fallthru
      _
  $region6: #{_channel_attention_3d.3} parent=0 // loop_footer
    %s12 = sadd.s32 1, %s8
  $region7: #{_channel_attention_3d.3} parent=0 // loop_footer_branch
    %7 = sbr.rel target = $region3
  $region8: #{_channel_attention_3d.3} parent=0 // loop_exit
    _

</llo_original>
